<compile_context>
chip_gen: v5e
topology: v5e:2x2
jax: 0.10.0
libtpu: 0.0.40
codegen_flags: <defaults>
</compile_context>

<pallas_src>
import functools

import jax
import jax.numpy as jnp
from jax.experimental import pallas as pl
from jax.experimental.pallas import tpu as pltpu


def _round_up(n, m):
    return ((n + m - 1) // m) * m


def _mlp_kernel(x_ref, w1_ref, b1_ref, w2_ref, b2_ref, o_ref):
    # x_ref : (tb, state_n)          f32   (native batch-major tile, streamed)
    # w1_ref: (state_n, hidden_pad)  f32   (resident)
    # b1_ref: (1, hidden_pad)        f32   (resident)
    # w2_ref: (hidden_pad, action_n) f32   (resident)
    # b2_ref: (1, action_n)          f32   (resident)
    # o_ref : (tb, action_n)         f32
    h = jnp.dot(x_ref[...], w1_ref[...], preferred_element_type=jnp.float32)
    h = jnp.maximum(h + b1_ref[...], 0.0)          # f32 VPU epilogue (v5e-safe)
    y = jnp.dot(h, w2_ref[...], preferred_element_type=jnp.float32)
    o_ref[...] = (y + b2_ref[...]).astype(o_ref.dtype)


def prepare_params(w1, b1, w2, b2):
    """One-time prep: zero-pad the hidden dim (50 -> 64), keep math layout, f32.

    Inputs use the math layout: w1 (state_n, hidden), w2 (hidden, action_n).
    """
    state_n, hidden = w1.shape
    hidden2, action_n = w2.shape
    assert hidden == hidden2
    hidden_pad = _round_up(hidden, 64)

    w1p = jnp.zeros((state_n, hidden_pad), jnp.float32)
    w1p = w1p.at[:, :hidden].set(w1.astype(jnp.float32))
    b1p = jnp.zeros((1, hidden_pad), jnp.float32)
    b1p = b1p.at[0, :hidden].set(b1.astype(jnp.float32))

    w2p = jnp.zeros((hidden_pad, action_n), jnp.float32)
    w2p = w2p.at[:hidden, :].set(w2.astype(jnp.float32))
    b2p = b2.astype(jnp.float32).reshape(1, action_n)

    return w1p, b1p, w2p, b2p


def _choose_batch_tile(B, block_b):
    """Batch tile: full extent for small B (single step, no padding/slicing);
    otherwise a 128-multiple tile capped so the grid has >= 2 steps (v7x)."""
    if B <= 128:
        return max(B, 1)
    block_b = _round_up(max(block_b, 128), 128)      # guard: multiple of 128
    b_pad = _round_up(B, 128)
    two_step_cap = max(128, (b_pad // 256) * 128)    # >= 2 grid steps
    return min(_round_up(min(block_b, B), 128), two_step_cap)


@functools.partial(jax.jit, static_argnames=("block_b",))
def dqn_net_forward(x, w1p, b1p, w2p, b2p, *, block_b=4096):
    """x: (B, state_n) f32; params from prepare_params. Returns (B, action_n) f32."""
    B, state_n = x.shape
    hidden_pad = w1p.shape[1]
    action_n = w2p.shape[1]

    tb = _choose_batch_tile(B, block_b)
    grid = (pl.cdiv(B, tb),)                          # partial final block OK

    return pl.pallas_call(
        _mlp_kernel,
        out_shape=jax.ShapeDtypeStruct((B, action_n), jnp.float32),
        grid=grid,
        in_specs=[
            pl.BlockSpec((tb, state_n), lambda i: (i, 0)),           # x streams
            pl.BlockSpec((state_n, hidden_pad), lambda i: (0, 0)),   # w1 resident
            pl.BlockSpec((1, hidden_pad), lambda i: (0, 0)),         # b1 resident
            pl.BlockSpec((hidden_pad, action_n), lambda i: (0, 0)),  # w2 resident
            pl.BlockSpec((1, action_n), lambda i: (0, 0)),           # b2 resident
        ],
        out_specs=pl.BlockSpec((tb, action_n), lambda i: (i, 0)),
        compiler_params=pltpu.CompilerParams(
            dimension_semantics=("parallel",),   # shard batch over v7x's 2 TCs
            vmem_limit_bytes=32 * 1024 * 1024,
        ),
    )(x, w1p, b1p, w2p, b2p)


def init_params(key, state_n, action_n, hidden=50):
    """Mirror the module init: weights ~ N(0, 0.1); biases ~ nn.Linear default."""
    k1, k2, k3, k4 = jax.random.split(key, 4)
    w1 = 0.1 * jax.random.normal(k1, (state_n, hidden), dtype=jnp.float32)
    w2 = 0.1 * jax.random.normal(k2, (hidden, action_n), dtype=jnp.float32)
    bound1 = 1.0 / (state_n ** 0.5)
    bound2 = 1.0 / (hidden ** 0.5)
    b1 = jax.random.uniform(k3, (hidden,), jnp.float32, -bound1, bound1)
    b2 = jax.random.uniform(k4, (action_n,), jnp.float32, -bound2, bound2)
    return w1, b1, w2, b2


def _ref_forward(x, w1, b1, w2, b2):
    return jnp.maximum(x @ w1 + b1, 0.0) @ w2 + b2


if __name__ == "__main__":
    key = jax.random.PRNGKey(0)
    k_x, k_p = jax.random.split(key)

    batch = 2
    state_n = 8      # small state dimension
    action_n = 4     # small action space
    hidden = 50      # fixed by the module definition

    x = jax.random.normal(k_x, (batch, state_n), dtype=jnp.float32)
    w1, b1, w2, b2 = init_params(k_p, state_n, action_n, hidden)
    params = prepare_params(w1, b1, w2, b2)

    # Latency path: single grid step, no wrapper-side layout ops at all.
    out = dqn_net_forward(x, *params)
    jax.block_until_ready(out)
    assert out.shape == (batch, action_n)
    ref = _ref_forward(x, w1, b1, w2, b2)
    assert jnp.allclose(out, ref, atol=2e-2, rtol=2e-2), \
        float(jnp.max(jnp.abs(out - ref)))

    # Throughput path: multi-step pipelined grid (>= 2 steps for v7x megacore).
    x_big = jax.random.normal(k_x, (4096, state_n), dtype=jnp.float32)
    out_big = dqn_net_forward(x_big, *params)
    jax.block_until_ready(out_big)
    ref_big = _ref_forward(x_big, w1, b1, w2, b2)
    assert out_big.shape == (4096, action_n)
    assert jnp.allclose(out_big, ref_big, atol=2e-2, rtol=2e-2), \
        float(jnp.max(jnp.abs(out_big - ref_big)))

    # Ragged batch: exercises the partial final block (masked boundary tile).
    x_odd = jax.random.normal(k_x, (300, state_n), dtype=jnp.float32)
    out_odd = dqn_net_forward(x_odd, *params)
    jax.block_until_ready(out_odd)
    ref_odd = _ref_forward(x_odd, w1, b1, w2, b2)
    assert out_odd.shape == (300, action_n)
    assert jnp.allclose(out_odd, ref_odd, atol=2e-2, rtol=2e-2), \
        float(jnp.max(jnp.abs(out_odd - ref_odd)))

    print("KERNEL_OK")
</pallas_src>

<mosaic_0001>
module attributes {stable_mosaic.version = 11 : i64} {
  func.func @_mlp_kernel(%arg0: i32, %arg1: memref<2x8xf32, #tpu.memory_space<vmem>>, %arg2: memref<8x64xf32, #tpu.memory_space<vmem>>, %arg3: memref<1x64xf32, #tpu.memory_space<vmem>>, %arg4: memref<64x4xf32, #tpu.memory_space<vmem>>, %arg5: memref<1x4xf32, #tpu.memory_space<vmem>>, %arg6: memref<2x4xf32, #tpu.memory_space<vmem>>) attributes {dimension_semantics = [#tpu.dimension_semantics<parallel>], iteration_bounds = array<i64: 1>, scalar_prefetch = 0 : i64, scratch_operands = 0 : i64, tpu.core_type = #tpu.core_type<tc>, window_params = [{transform_indices = @transform_0, window_bounds = array<i64: 2, 8>}, {pipeline_mode = #tpu.pipeline_mode<synchronous>, transform_indices = @transform_1, window_bounds = array<i64: 8, 64>}, {pipeline_mode = #tpu.pipeline_mode<synchronous>, transform_indices = @transform_2, window_bounds = array<i64: 1, 64>}, {pipeline_mode = #tpu.pipeline_mode<synchronous>, transform_indices = @transform_3, window_bounds = array<i64: 64, 4>}, {pipeline_mode = #tpu.pipeline_mode<synchronous>, transform_indices = @transform_4, window_bounds = array<i64: 1, 4>}, {transform_indices = @transform_5, window_bounds = array<i64: 2, 4>}]} {
    %c0 = arith.constant 0 : index
    %c0_0 = arith.constant 0 : index
    %0 = vector.load %arg1[%c0, %c0_0] : memref<2x8xf32, #tpu.memory_space<vmem>>, vector<2x8xf32>
    %c0_1 = arith.constant 0 : index
    %c0_2 = arith.constant 0 : index
    %1 = vector.load %arg2[%c0_1, %c0_2] : memref<8x64xf32, #tpu.memory_space<vmem>>, vector<8x64xf32>
    %cst = arith.constant dense<0.000000e+00> : vector<2x64xf32>
    %2 = tpu.matmul %0, %1, %cst {dimension_numbers = #tpu.dot_dimension_numbers<[1], [0], [0], [1], [0, 0, 1, 1], [], []>} : vector<2x8xf32>, vector<8x64xf32>, vector<2x64xf32> -> vector<2x64xf32>
    %c0_3 = arith.constant 0 : index
    %c0_4 = arith.constant 0 : index
    %3 = vector.load %arg3[%c0_3, %c0_4] : memref<1x64xf32, #tpu.memory_space<vmem>>, vector<1x64xf32>
    %4 = vector.broadcast %3 : vector<1x64xf32> to vector<2x64xf32>
    %5 = arith.addf %2, %4 : vector<2x64xf32>
    %cst_5 = arith.constant 0.000000e+00 : f32
    %6 = vector.broadcast %cst_5 : f32 to vector<2x64xf32>
    %7 = arith.maximumf %5, %6 : vector<2x64xf32>
    %c0_6 = arith.constant 0 : index
    %c0_7 = arith.constant 0 : index
    %8 = vector.load %arg4[%c0_6, %c0_7] : memref<64x4xf32, #tpu.memory_space<vmem>>, vector<64x4xf32>
    %cst_8 = arith.constant dense<0.000000e+00> : vector<2x4xf32>
    %9 = tpu.matmul %7, %8, %cst_8 {dimension_numbers = #tpu.dot_dimension_numbers<[1], [0], [0], [1], [0, 0, 1, 1], [], []>} : vector<2x64xf32>, vector<64x4xf32>, vector<2x4xf32> -> vector<2x4xf32>
    %c0_9 = arith.constant 0 : index
    %c0_10 = arith.constant 0 : index
    %10 = vector.load %arg5[%c0_9, %c0_10] : memref<1x4xf32, #tpu.memory_space<vmem>>, vector<1x4xf32>
    %11 = vector.broadcast %10 : vector<1x4xf32> to vector<2x4xf32>
    %12 = arith.addf %9, %11 : vector<2x4xf32>
    %c0_11 = arith.constant 0 : index
    %c0_12 = arith.constant 0 : index
    %13 = vector.load %arg6[%c0_11, %c0_12] : memref<2x4xf32, #tpu.memory_space<vmem>>, vector<2x4xf32>
    tpu.vector_store %arg6[%c0_11, %c0_12], %12 {strides = array<i32>} : memref<2x4xf32, #tpu.memory_space<vmem>>, vector<2x4xf32>,
    return
  }
  func.func @transform_0(%arg0: i32) -> (i32, i32) {
    %c0_i32 = arith.constant 0 : i32
    %c0_i32_0 = arith.constant 0 : i32
    return %arg0, %c0_i32 : i32, i32
  }
  func.func @transform_1(%arg0: i32) -> (i32, i32) {
    %c0_i32 = arith.constant 0 : i32
    %c0_i32_0 = arith.constant 0 : i32
    %c0_i32_1 = arith.constant 0 : i32
    return %c0_i32, %c0_i32_0 : i32, i32
  }
  func.func @transform_2(%arg0: i32) -> (i32, i32) {
    %c0_i32 = arith.constant 0 : i32
    %c0_i32_0 = arith.constant 0 : i32
    %c0_i32_1 = arith.constant 0 : i32
    return %c0_i32, %c0_i32_0 : i32, i32
  }
  func.func @transform_3(%arg0: i32) -> (i32, i32) {
    %c0_i32 = arith.constant 0 : i32
    %c0_i32_0 = arith.constant 0 : i32
    %c0_i32_1 = arith.constant 0 : i32
    return %c0_i32, %c0_i32_0 : i32, i32
  }
  func.func @transform_4(%arg0: i32) -> (i32, i32) {
    %c0_i32 = arith.constant 0 : i32
    %c0_i32_0 = arith.constant 0 : i32
    %c0_i32_1 = arith.constant 0 : i32
    return %c0_i32, %c0_i32_0 : i32, i32
  }
  func.func @transform_5(%arg0: i32) -> (i32, i32) {
    %c0_i32 = arith.constant 0 : i32
    %c0_i32_0 = arith.constant 0 : i32
    return %arg0, %c0_i32 : i32, i32
  }
}

</mosaic_0001>

<llo_original>
// kernel: dqn_net_forward.1
$region0: #{dqn_net_forward.1}
  #allocation0 [shape = 'u32[]', space=smem, size = 0x4, offset = 0x4, fixed_abs, tag = 'smem constant byte address 0x4 - core index']
  #allocation1 [shape = 'u32[72,128]{1,0:T(1,128)}', space=vmem, size = 0x9000, scoped, tag = 'internal scratch']
  %s0 = inlined_call_operand.vmem [shape: f32[2,8], index: 0, kind: input, shape index: {}]
  %s1 = inlined_call_operand.vmem [shape: f32[8,64], index: 1, kind: input, shape index: {}]
  %s2 = inlined_call_operand.vmem [shape: f32[1,64], index: 2, kind: input, shape index: {}]
  %s3 = inlined_call_operand.vmem [shape: f32[64,4], index: 3, kind: input, shape index: {}]
  %s4 = inlined_call_operand.vmem [shape: f32[1,4], index: 4, kind: input, shape index: {}]
  %s5 = inlined_call_operand.hbm [shape: f32[2,4], index: 5, kind: output, shape index: {}]
  %s6 = sld [smem:[#allocation0]]
  $region30: #{dqn_net_forward.1} parent=0
    _
  %s8 = ssub.s32 1, %s6
  %s9 = scalar_select 0, %s8, %s6
  $region1: #{dqn_net_forward.1} parent=0
    #allocation2 [shape = 'u8[1024]{0}', space=vmem, size = 0x400, scoped, tag = 'output window, operand 0, single buffered']
    #allocation3 [shape = 's32[1]{0}', space=sflag, size = 0x4, scoped, tag = 'scoped memory for dqn_net_forward.1']
    %10 = vsyncpa [#allocation3], 0
    // Predicated region
    $region2: #{dqn_net_forward.1} parent=1 // pred_check
      _
    $region3: #{dqn_net_forward.1} parent=1 // pred_check_branch
      %12 = sbr.rel (0) target = $region5
    $region4: #{dqn_net_forward.1} parent=1 // pred_region
      _
    $region5: #{dqn_net_forward.1} parent=1 // pred_fallthru
      _
    // Predicated region
    $region6: #{dqn_net_forward.1} parent=1 // pred_check
      _
    $region7: #{dqn_net_forward.1} parent=1 // pred_check_branch
      %14 = sbr.rel (0) target = $region9
    $region8: #{dqn_net_forward.1} parent=1 // pred_region
      _
    $region9: #{dqn_net_forward.1} parent=1 // pred_fallthru
      _
    // Predicated region
    $region10: #{dqn_net_forward.1} parent=1 // pred_check
      _
    $region11: #{dqn_net_forward.1} parent=1 // pred_check_branch
      %16 = sbr.rel (0) target = $region13
    $region12: #{dqn_net_forward.1} parent=1 // pred_region
      _
    $region13: #{dqn_net_forward.1} parent=1 // pred_fallthru
      _
    // Predicated region
    $region14: #{dqn_net_forward.1} parent=1 // pred_check
      _
    $region15: #{dqn_net_forward.1} parent=1 // pred_check_branch
      %18 = sbr.rel (0) target = $region17
    $region16: #{dqn_net_forward.1} parent=1 // pred_region
      _
    $region17: #{dqn_net_forward.1} parent=1 // pred_fallthru
      _
    // Predicated region
    $region18: #{dqn_net_forward.1} parent=1 // pred_check
      _
    $region19: #{dqn_net_forward.1} parent=1 // pred_check_branch
      %20 = sbr.rel (0) target = $region21
    $region20: #{dqn_net_forward.1} parent=1 // pred_region
      _
    $region21: #{dqn_net_forward.1} parent=1 // pred_fallthru
      _
    %v21 = vld [vmem:[%s0] sm:$0x3]
    %v22 = vld [vmem:[%s1] sm:$0xff]
    %v23 = vld [vmem:[%s2] sm:$0x1]
    %v25 = vperm.slane %v23, 0
    %vm27 = vcmask 64512
    %v29 = vsel %vm27, %v21, 0
    %31 = vmatpush.msra.mxu0 0.0
    %32 = vmatpush.msra.mxu0 0.0
    %33 = vmatpush.msra.mxu0 0.0
    %34 = vmatpush.msra.mxu0 0.0
    %35 = vmatpush.msra.mxu0 0.0
    %36 = vmatpush.msra.mxu0 0.0
    %37 = vmatpush.msra.mxu0 0.0
    %38 = vmatpush.msra.mxu0 0.0
    %39 = vmatpush.msra.mxu0 0.0
    %40 = vmatpush.msra.mxu0 0.0
    %41 = vmatpush.msra.mxu0 0.0
    %42 = vmatpush.msra.mxu0 0.0
    %43 = vmatpush.msra.mxu0 0.0
    %44 = vmatpush.msra.mxu0 0.0
    %45 = vmatpush.msra.mxu0 0.0
    %46 = vmatpush.msra.mxu0 %v22
    %47 = vmatmul.f32.gmra.mxu0 %v29
    %v48 = vpop.f32.mrf.mxu0
    %v49 = vadd.f32 %v25, %v48
    %50 = vdwg.mxu0
    %v51 = vmax.f32 %v49, 0.0
    %v52 = vld [vmem:[%s3] sm:$0xff]
    %v53 = vld [vmem:[%s3 + $0x8] sm:$0xff]
    %v54 = vld [vmem:[%s3 + $0x10] sm:$0xff]
    %v55 = vld [vmem:[%s3 + $0x18] sm:$0xff]
    %v56 = vld [vmem:[%s3 + $0x20] sm:$0xff]
    %v57 = vld [vmem:[%s3 + $0x28] sm:$0xff]
    %v58 = vld [vmem:[%s3 + $0x30] sm:$0xff]
    %v59 = vld [vmem:[%s3 + $0x38] sm:$0xff]
    %v60 = vld [vmem:[%s4] sm:$0x1]
    %v62 = vperm.slane %v60, 0
    %vm64 = vcmask 523264
    %v66 = vsel %vm64, %v51, 0
    %68 = vmatpush.msra.mxu0 0.0
    %69 = vmatpush.msra.mxu0 0.0
    %70 = vmatpush.msra.mxu0 0.0
    %71 = vmatpush.msra.mxu0 0.0
    %72 = vmatpush.msra.mxu0 0.0
    %73 = vmatpush.msra.mxu0 0.0
    %74 = vmatpush.msra.mxu0 0.0
    %75 = vmatpush.msra.mxu0 0.0
    %76 = vmatpush.msra.mxu0 %v59
    %77 = vmatpush.msra.mxu0 %v58
    %78 = vmatpush.msra.mxu0 %v57
    %79 = vmatpush.msra.mxu0 %v56
    %80 = vmatpush.msra.mxu0 %v55
    %81 = vmatpush.msra.mxu0 %v54
    %82 = vmatpush.msra.mxu0 %v53
    %83 = vmatpush.msra.mxu0 %v52
    %84 = vmatmul.f32.gmra.mxu0 %v66
    %v85 = vpop.f32.mrf.mxu0
    %v86 = vadd.f32 %v62, %v85
    %87 = vdwg.mxu0
    %vm88 = vcmask 25600
    %89 = vst.msk [vmem:[#allocation2] sm:$0x3] %vm88, %v86
    // Predicated region
    $region22: #{dqn_net_forward.1} parent=1 // pred_check
      _
    $region23: #{dqn_net_forward.1} parent=1 // pred_check_branch
      %91 = sbr.rel (0) target = $region25
    $region24: #{dqn_net_forward.1} parent=1 // pred_region
      %93 = vsyncadd [#allocation3], 0
      %s95 = sshll.u32 [#allocation2], 4
      %s96 = int_to_ptr.vmem [resolvable:$true] %s95
      %s97 = sshll.u32 %s5, 4
      %s98 = int_to_ptr.hbm [resolvable:$true] %s97
      %100 = dma.vmem_to_hbm [thread:$0]  %s96, 32, %s98, [#allocation3]
    $region25: #{dqn_net_forward.1} parent=1 // pred_fallthru
      _
    // Predicated region
    $region26: #{dqn_net_forward.1} parent=1 // pred_check
      _
    $region27: #{dqn_net_forward.1} parent=1 // pred_check_branch
      %102 = sbr.rel (0) target = $region29
    $region28: #{dqn_net_forward.1} parent=1 // pred_region
      %104 = dma.done [#allocation3], 32
    $region29: #{dqn_net_forward.1} parent=1 // pred_fallthru
      _
    %105 = vsyncpa [#allocation3], 1

</llo_original>
